<compile_context>
chip_gen: v7x
topology: tpu7x:2x2x1
jax: 0.10.0
libtpu: 0.0.40
codegen_flags: <defaults>
</compile_context>

<pallas_src>
import functools

import jax
import jax.numpy as jnp
from jax.experimental import pallas as pl
from jax.experimental.pallas import tpu as pltpu

LANE = 128
SUBLANE = 8


def _round_up(n, m):
    return ((n + m - 1) // m) * m


def linear_sigmoid_kernel(x_ref, w_ref, b_ref, o_ref):
    # (TB, 8) x (8, 128) MXU matmul, f32 accumulation.
    h = jnp.dot(x_ref[...], w_ref[...], preferred_element_type=jnp.float32)
    h = h + b_ref[...]
    # sigmoid(h) = 0.5 * tanh(0.5*h) + 0.5  -> one EUP op, exact numerics.
    o_ref[...] = (0.5 * jnp.tanh(0.5 * h) + 0.5).astype(o_ref.dtype)


@functools.partial(jax.jit, static_argnames=("out_features",))
def linear_sigmoid(x, w_pad, b_pad, out_features):
    """x: [B, IN] f32.  w_pad: [K_PAD, OUT_PAD] f32.  b_pad: [1, OUT_PAD] f32."""
    B, IN = x.shape
    K_PAD, OUT_PAD = w_pad.shape

    # Batch padded only to one sublane (8), never to a multiple of TB.
    B8 = _round_up(B, SUBLANE)
    # Tile: large enough to amortize per-step overhead (cap 1024 rows), but sized
    # so big batches still give >=2 grid steps for megacore sharding on v7x.
    TB = max(SUBLANE, min(1024, _round_up(pl.cdiv(B8, 2), SUBLANE)))
    grid = (pl.cdiv(B8, TB),)

    # Single small fused pad (batch -> multiple of 8, K: 5 -> 8). Under jit this,
    # the pallas_call, and the final slice are one dispatch.
    x_p = jnp.pad(x, ((0, B8 - B), (0, K_PAD - IN)))

    out_p = pl.pallas_call(
        linear_sigmoid_kernel,
        out_shape=jax.ShapeDtypeStruct((B8, OUT_PAD), x.dtype),
        grid=grid,
        in_specs=[
            pl.BlockSpec((TB, K_PAD), lambda i: (i, 0)),        # x tile (pipelined)
            pl.BlockSpec((K_PAD, OUT_PAD), lambda i: (0, 0)),   # resident weight
            pl.BlockSpec((1, OUT_PAD), lambda i: (0, 0)),       # resident bias
        ],
        out_specs=pl.BlockSpec((TB, OUT_PAD), lambda i: (i, 0)),  # lane-dense out
        compiler_params=pltpu.CompilerParams(
            dimension_semantics=("parallel",),
        ),
    )(x_p, w_pad, b_pad)

    # Fused into the same jit; no extra memory pass.
    return out_p[:B, :out_features]


class Model:
    """JAX equivalent of the PyTorch Model: Linear(5, 10) -> sigmoid."""

    def __init__(self, key, in_features=5, out_features=10):
        kw, kb = jax.random.split(key)
        bound = 1.0 / jnp.sqrt(jnp.float32(in_features))
        self.in_features = in_features
        self.out_features = out_features
        # PyTorch weight is [OUT, IN]; store transposed as [IN, OUT] for x @ w.
        self.w = jax.random.uniform(
            kw, (in_features, out_features), jnp.float32, -bound, bound
        )
        self.b = jax.random.uniform(
            kb, (out_features,), jnp.float32, -bound, bound
        )
        # Pre-padded kernel operands, hoisted out of the call path:
        #   K padded only to one sublane (8), N kept lane-dense (128).
        k_pad = _round_up(in_features, SUBLANE)
        out_pad = _round_up(out_features, LANE)
        self.w_pad = (
            jnp.zeros((k_pad, out_pad), jnp.float32)
            .at[:in_features, :out_features]
            .set(self.w)
        )
        self.b_pad = (
            jnp.zeros((1, out_pad), jnp.float32).at[0, :out_features].set(self.b)
        )

    def __call__(self, x):
        return linear_sigmoid(x, self.w_pad, self.b_pad, self.out_features)


if __name__ == "__main__":
    key = jax.random.PRNGKey(0)
    k_model, k_x, k_big = jax.random.split(key, 3)

    model = Model(k_model)

    # Spec-sized input: matches torch.randn(1, 5).
    x = jax.random.normal(k_x, (1, 5), jnp.float32)
    out = jax.block_until_ready(model(x))
    ref = jax.nn.sigmoid(x @ model.w + model.b)
    assert out.shape == (1, 10)
    assert jnp.allclose(out, ref, atol=1e-4, rtol=1e-4), "small-batch mismatch"

    # Exercise the multi-grid-step / padded-batch path as well (B=300 -> B8=304,
    # TB=152, 2 grid steps).
    xb = jax.random.normal(k_big, (300, 5), jnp.float32)
    outb = jax.block_until_ready(model(xb))
    refb = jax.nn.sigmoid(xb @ model.w + model.b)
    assert outb.shape == (300, 10)
    assert jnp.allclose(outb, refb, atol=1e-4, rtol=1e-4), "batched mismatch"

    print("KERNEL_OK")
</pallas_src>

<mosaic_0001>
module attributes {stable_mosaic.version = 11 : i64} {
  func.func @linear_sigmoid_kernel(%arg0: i32, %arg1: memref<8x8xf32, #tpu.memory_space<vmem>>, %arg2: memref<8x128xf32, #tpu.memory_space<vmem>>, %arg3: memref<1x128xf32, #tpu.memory_space<vmem>>, %arg4: memref<8x128xf32, #tpu.memory_space<vmem>>) attributes {dimension_semantics = [#tpu.dimension_semantics<parallel>], iteration_bounds = array<i64: 1>, scalar_prefetch = 0 : i64, scratch_operands = 0 : i64, tpu.core_type = #tpu.core_type<tc>, window_params = [{transform_indices = @transform_0, window_bounds = array<i64: 8, 8>}, {pipeline_mode = #tpu.pipeline_mode<synchronous>, transform_indices = @transform_1, window_bounds = array<i64: 8, 128>}, {pipeline_mode = #tpu.pipeline_mode<synchronous>, transform_indices = @transform_2, window_bounds = array<i64: 1, 128>}, {transform_indices = @transform_3, window_bounds = array<i64: 8, 128>}]} {
    %c0 = arith.constant 0 : index
    %c0_0 = arith.constant 0 : index
    %0 = vector.load %arg1[%c0, %c0_0] : memref<8x8xf32, #tpu.memory_space<vmem>>, vector<8x8xf32>
    %c0_1 = arith.constant 0 : index
    %c0_2 = arith.constant 0 : index
    %1 = vector.load %arg2[%c0_1, %c0_2] : memref<8x128xf32, #tpu.memory_space<vmem>>, vector<8x128xf32>
    %cst = arith.constant dense<0.000000e+00> : vector<8x128xf32>
    %2 = tpu.matmul %0, %1, %cst {dimension_numbers = #tpu.dot_dimension_numbers<[1], [0], [0], [1], [0, 0, 1, 1], [], []>} : vector<8x8xf32>, vector<8x128xf32>, vector<8x128xf32> -> vector<8x128xf32>
    %c0_3 = arith.constant 0 : index
    %c0_4 = arith.constant 0 : index
    %3 = vector.load %arg3[%c0_3, %c0_4] : memref<1x128xf32, #tpu.memory_space<vmem>>, vector<1x128xf32>
    %4 = vector.broadcast %3 : vector<1x128xf32> to vector<8x128xf32>
    %5 = arith.addf %2, %4 : vector<8x128xf32>
    %cst_5 = arith.constant 5.000000e-01 : f32
    %6 = vector.broadcast %cst_5 : f32 to vector<8x128xf32>
    %7 = arith.mulf %6, %5 : vector<8x128xf32>
    %8 = math.tanh %7 : vector<8x128xf32>
    %cst_6 = arith.constant 5.000000e-01 : f32
    %9 = vector.broadcast %cst_6 : f32 to vector<8x128xf32>
    %10 = arith.mulf %9, %8 : vector<8x128xf32>
    %cst_7 = arith.constant 5.000000e-01 : f32
    %11 = vector.broadcast %cst_7 : f32 to vector<8x128xf32>
    %12 = arith.addf %10, %11 : vector<8x128xf32>
    %c0_8 = arith.constant 0 : index
    %c0_9 = arith.constant 0 : index
    %13 = vector.load %arg4[%c0_8, %c0_9] : memref<8x128xf32, #tpu.memory_space<vmem>>, vector<8x128xf32>
    tpu.vector_store %arg4[%c0_8, %c0_9], %12 {strides = array<i32>} : memref<8x128xf32, #tpu.memory_space<vmem>>, vector<8x128xf32>,
    return
  }
  func.func @transform_0(%arg0: i32) -> (i32, i32) {
    %c0_i32 = arith.constant 0 : i32
    %c0_i32_0 = arith.constant 0 : i32
    return %arg0, %c0_i32 : i32, i32
  }
  func.func @transform_1(%arg0: i32) -> (i32, i32) {
    %c0_i32 = arith.constant 0 : i32
    %c0_i32_0 = arith.constant 0 : i32
    %c0_i32_1 = arith.constant 0 : i32
    return %c0_i32, %c0_i32_0 : i32, i32
  }
  func.func @transform_2(%arg0: i32) -> (i32, i32) {
    %c0_i32 = arith.constant 0 : i32
    %c0_i32_0 = arith.constant 0 : i32
    %c0_i32_1 = arith.constant 0 : i32
    return %c0_i32, %c0_i32_0 : i32, i32
  }
  func.func @transform_3(%arg0: i32) -> (i32, i32) {
    %c0_i32 = arith.constant 0 : i32
    %c0_i32_0 = arith.constant 0 : i32
    return %arg0, %c0_i32 : i32, i32
  }
}

</mosaic_0001>

<llo_original>
// kernel: linear_sigmoid.1
$region0: #{linear_sigmoid.1}
  #allocation0 [shape = 'u32[]', space=smem, size = 0x4, offset = 0x4, fixed_abs, tag = 'smem constant byte address 0x4 - core index']
  #allocation1 [shape = 'u32[144,128]{1,0:T(1,128)}', space=vmem, size = 0x12000, scoped, tag = 'internal scratch']
  %s0 = inlined_call_operand.vmem [shape: f32[8,8], index: 0, kind: input, shape index: {}]
  %s1 = inlined_call_operand.vmem [shape: f32[8,128], index: 1, kind: input, shape index: {}]
  %s2 = inlined_call_operand.vmem [shape: f32[1,128], index: 2, kind: input, shape index: {}]
  %s3 = inlined_call_operand.vmem [shape: f32[8,128], index: 3, kind: output, shape index: {}]
  %s4 = sld [smem:[#allocation0]]
  $region22: #{linear_sigmoid.1} parent=0
    _
  %s6 = ssub.s32 1, %s4
  %s7 = scalar_select 0, %s6, %s4
  // Predicated region
  $region2: #{linear_sigmoid.1} parent=0 // pred_check
    _
  $region3: #{linear_sigmoid.1} parent=0 // pred_check_branch
    %9 = sbr.rel (0) target = $region5
  $region4: #{linear_sigmoid.1} parent=0 // pred_region
    _
  $region5: #{linear_sigmoid.1} parent=0 // pred_fallthru
    _
  // Predicated region
  $region6: #{linear_sigmoid.1} parent=0 // pred_check
    _
  $region7: #{linear_sigmoid.1} parent=0 // pred_check_branch
    %11 = sbr.rel (0) target = $region9
  $region8: #{linear_sigmoid.1} parent=0 // pred_region
    _
  $region9: #{linear_sigmoid.1} parent=0 // pred_fallthru
    _
  // Predicated region
  $region10: #{linear_sigmoid.1} parent=0 // pred_check
    _
  $region11: #{linear_sigmoid.1} parent=0 // pred_check_branch
    %13 = sbr.rel (0) target = $region13
  $region12: #{linear_sigmoid.1} parent=0 // pred_region
    _
  $region13: #{linear_sigmoid.1} parent=0 // pred_fallthru
    _
  %v14 = vld [vmem:[%s0] sm:$0xff]
  %v15 = vld [vmem:[%s1] sm:$0xff]
  %v16 = vld [vmem:[%s2] sm:$0x1]
  %v18 = vlaneseq
  %v19 = vshrl.u32 %v18, 7
  %v20 = vsub.s32 0, %v19
  %v21 = vrot.slane %v16, %v20
  %vm23 = vcmask 64512
  %v25 = vsel %vm23, %v14, 0
  %27 = vmatprep.subr.mxu0 0.0
  %28 = vmatpush1.msra.mxu0 %v15
  %29 = vmatprep.subr.mxu0 0.0
  %30 = vmatpush1.msra.mxu0 0.0
  %31 = vmatprep.subr.mxu0 0.0
  %32 = vmatpush1.msra.mxu0 0.0
  %33 = vmatprep.subr.mxu0 0.0
  %34 = vmatpush1.msra.mxu0 0.0
  %35 = vmatprep.subr.mxu0 0.0
  %36 = vmatpush1.msra.mxu0 0.0
  %37 = vmatprep.subr.mxu0 0.0
  %38 = vmatpush1.msra.mxu0 0.0
  %39 = vmatprep.subr.mxu0 0.0
  %40 = vmatpush1.msra.mxu0 0.0
  %41 = vmatprep.subr.mxu0 0.0
  %42 = vmatpush1.msra.mxu0 0.0
  %43 = vmatprep.subr.mxu0 0.0
  %44 = vmatpush1.msra.mxu0 0.0
  %45 = vmatprep.subr.mxu0 0.0
  %46 = vmatpush1.msra.mxu0 0.0
  %47 = vmatprep.subr.mxu0 0.0
  %48 = vmatpush1.msra.mxu0 0.0
  %49 = vmatprep.subr.mxu0 0.0
  %50 = vmatpush1.msra.mxu0 0.0
  %51 = vmatprep.subr.mxu0 0.0
  %52 = vmatpush1.msra.mxu0 0.0
  %53 = vmatprep.subr.mxu0 0.0
  %54 = vmatpush1.msra.mxu0 0.0
  %55 = vmatprep.subr.mxu0 0.0
  %56 = vmatpush1.msra.mxu0 0.0
  %57 = vmatprep.subr.mxu0 0.0
  %58 = vmatpush1.msra.mxu0 0.0
  %59 = vmatprep.subr.mxu0 0.0
  %60 = vmatpush1.msra.mxu0 0.0
  %61 = vmatprep.subr.mxu0 0.0
  %62 = vmatpush1.msra.mxu0 0.0
  %63 = vmatprep.subr.mxu0 0.0
  %64 = vmatpush1.msra.mxu0 0.0
  %65 = vmatprep.subr.mxu0 0.0
  %66 = vmatpush1.msra.mxu0 0.0
  %67 = vmatprep.subr.mxu0 0.0
  %68 = vmatpush1.msra.mxu0 0.0
  %69 = vmatprep.subr.mxu0 0.0
  %70 = vmatpush1.msra.mxu0 0.0
  %71 = vmatprep.subr.mxu0 0.0
  %72 = vmatpush1.msra.mxu0 0.0
  %73 = vmatprep.subr.mxu0 0.0
  %74 = vmatpush1.msra.mxu0 0.0
  %75 = vmatprep.subr.mxu0 0.0
  %76 = vmatpush1.msra.mxu0 0.0
  %77 = vmatprep.subr.mxu0 0.0
  %78 = vmatpush1.msra.mxu0 0.0
  %79 = vmatprep.subr.mxu0 0.0
  %80 = vmatpush1.msra.mxu0 0.0
  %81 = vmatprep.subr.mxu0 0.0
  %82 = vmatpush1.msra.mxu0 0.0
  %83 = vmatprep.subr.mxu0 0.0
  %84 = vmatpush1.msra.mxu0 0.0
  %85 = vmatprep.subr.mxu0 0.0
  %86 = vmatpush1.msra.mxu0 0.0
  %87 = vmatprep.subr.mxu0 0.0
  %88 = vmatpush1.msra.mxu0 0.0
  %89 = vmatprep.subr.mxu0 0.0
  %90 = vmatpush1.msra.mxu0 0.0
  %91 = vmatprep.mubr.f32.mxu0 0.0
  %92 = vmatmul.mubr.f32.gmra.mrb[0].mxu0 %v25
  %v93 = vpop.f32.mrb[0].mxu0
  %v94 = vadd.f32 %v21, %v93
  %v95 = vpop.f32.mrb[0].mxu0
  %96 = vdwg.mxu0
  %v97 = vmul.f32 %v94, 0.5
  %v98 = vtanh.pop %v97
  %v99 = vmul.f32 %v98, 0.5
  %v100 = vadd.f32 %v99, 0.5
  %101 = vst [vmem:[%s3] sm:$0xff] %v100
  // Predicated region
  $region14: #{linear_sigmoid.1} parent=0 // pred_check
    _
  $region15: #{linear_sigmoid.1} parent=0 // pred_check_branch
    %103 = sbr.rel (0) target = $region17
  $region16: #{linear_sigmoid.1} parent=0 // pred_region
    _
  $region17: #{linear_sigmoid.1} parent=0 // pred_fallthru
    _
  // Predicated region
  $region18: #{linear_sigmoid.1} parent=0 // pred_check
    _
  $region19: #{linear_sigmoid.1} parent=0 // pred_check_branch
    %105 = sbr.rel (0) target = $region21
  $region20: #{linear_sigmoid.1} parent=0 // pred_region
    _
  $region21: #{linear_sigmoid.1} parent=0 // pred_fallthru
    _

</llo_original>
